<compile_context>
chip_gen: v7x
topology: tpu7x:2x2x1
jax: 0.10.0
libtpu: 0.0.40
codegen_flags: <defaults>
</compile_context>

<pallas_src>
import functools

import jax
import jax.numpy as jnp
from jax.experimental import pallas as pl
from jax.experimental.pallas import tpu as pltpu


def _round_up(x, m):
    return ((x + m - 1) // m) * m


# ---------------------------------------------------------------------------
# Pallas kernel: fused  (x @ W) + b  -> * lr_decay -> tanh -> * move_bound
# ---------------------------------------------------------------------------
def _trans_pred_kernel(x_ref, w_ref, b_ref, o_ref, *, lr_decay, move_bound):
    # x_ref: (b_tile, F) bf16   w_ref: (F, O) bf16   b_ref: (1, O) f32
    # o_ref: (b_tile, O) f32
    y = jnp.dot(x_ref[...], w_ref[...], preferred_element_type=jnp.float32)
    y = (y + b_ref[...]) * lr_decay
    o_ref[...] = jnp.tanh(y) * move_bound          # tanh lowers to the EUP slot


# ---------------------------------------------------------------------------
# One-time parameter prep (hoisted out of the per-call wrapper)
# ---------------------------------------------------------------------------
def prepare_trans_pred_params(weight, bias):
    """weight: (3, F) Linear weight (torch layout); bias: (3,).

    Build once at parameter init and reuse across forwards.
    """
    w_t = jnp.asarray(weight, jnp.float32).T.astype(jnp.bfloat16)    # (F, 3)
    b_row = jnp.asarray(bias, jnp.float32).reshape(1, -1)            # (1, 3)
    return w_t, b_row


# ---------------------------------------------------------------------------
# Forward wrapper
# ---------------------------------------------------------------------------
def trans_pred_forward(x, w_t, b_row, *, lr_decay, move_bound, b_tile=512):
    """x: (B, ...) flattened to (B, F); w_t: (F, 3) bf16; b_row: (1, 3) f32.

    NOTE: lr_decay / move_bound are baked as compile-time constants (changing
    them triggers a recompile).  For tiny B (single-step grid) the whole
    pallas_call is launch/DMA-overhead bound; callers with a handful of rows
    may prefer a plain XLA dot+tanh, but the kernel is still correct there.
    """
    B = x.shape[0]
    x2 = x.reshape(B, -1).astype(jnp.bfloat16)          # x.view(B, -1), bf16 read
    F = x2.shape[1]
    O = w_t.shape[1]

    # Batch tiling: sublane-safe (multiple of 16 for the packed bf16 input),
    # capped at (padded) B so tiny batches don't over-pad.
    SUB = 16
    bt = max(SUB, min(_round_up(b_tile, SUB), _round_up(B, SUB)))
    Bp = _round_up(B, bt)
    if Bp != B:
        x2 = jnp.pad(x2, ((0, Bp - B), (0, 0)))         # only when needed

    cost = pl.CostEstimate(
        flops=2 * Bp * F * O,
        transcendentals=Bp * O,
        bytes_accessed=Bp * F * 2 + F * O * 2 + O * 4 + Bp * O * 4,
    )

    y = pl.pallas_call(
        functools.partial(
            _trans_pred_kernel,
            lr_decay=float(lr_decay),
            move_bound=float(move_bound),
        ),
        out_shape=jax.ShapeDtypeStruct((Bp, O), jnp.float32),
        grid_spec=pltpu.PrefetchScalarGridSpec(
            num_scalar_prefetch=0,
            grid=(Bp // bt,),
            in_specs=[
                pl.BlockSpec((bt, F), lambda i: (i, 0)),   # full-F block (legal)
                pl.BlockSpec((F, O), lambda i: (0, 0)),    # weight, resident
                pl.BlockSpec((1, O), lambda i: (0, 0)),    # bias, resident
            ],
            out_specs=pl.BlockSpec((bt, O), lambda i: (i, 0)),
        ),
        compiler_params=pltpu.CompilerParams(
            dimension_semantics=("parallel",)),
        cost_estimate=cost,
    )(x2, w_t, b_row)

    out = y[:B]                                          # drop batch padding
    return jnp.squeeze(out)                              # torch.squeeze


# ---------------------------------------------------------------------------
# Pure-JAX reference for the correctness check
# ---------------------------------------------------------------------------
def trans_pred_reference(x, weight, bias, *, lr_decay, move_bound):
    B = x.shape[0]
    x2 = x.reshape(B, -1).astype(jnp.float32)
    y = x2 @ weight.astype(jnp.float32).T + bias.astype(jnp.float32)
    return jnp.squeeze(jnp.tanh(y * lr_decay) * move_bound)


if __name__ == "__main__":
    # config stand-ins (values not given in the snippet; forward semantics only
    # depend on them as scalars).
    PRIM_NUM = 4
    TRANS_LR_DECAY = 0.1
    MOVE_BOUND = 0.5
    # TODO(synk): config.gridBound is stored but unused in forward(); omitted.

    B = 2
    F = 128 + PRIM_NUM * 10                              # 168 in-features
    O = 3

    key = jax.random.PRNGKey(0)
    kx, kw, kb, kx2 = jax.random.split(key, 4)
    x = jax.random.normal(kx, (B, F), jnp.float32)
    weight = jax.random.normal(kw, (O, F), jnp.float32) * 0.02   # module init std
    bias = jax.random.normal(kb, (O,), jnp.float32) * 0.02       # nonzero: tests add

    # one-time parameter prep (hoisted out of the forward path)
    w_t, b_row = prepare_trans_pred_params(weight, bias)

    out = jax.block_until_ready(
        trans_pred_forward(x, w_t, b_row,
                           lr_decay=TRANS_LR_DECAY, move_bound=MOVE_BOUND))
    ref = trans_pred_reference(x, weight, bias,
                               lr_decay=TRANS_LR_DECAY, move_bound=MOVE_BOUND)
    assert out.shape == (B, O), out.shape
    assert jnp.allclose(out, ref, rtol=2e-3, atol=2e-3), \
        float(jnp.max(jnp.abs(out - ref)))

    # module-default zero-bias init path
    w_t0, b_row0 = prepare_trans_pred_params(weight, jnp.zeros((O,), jnp.float32))
    out0 = jax.block_until_ready(
        trans_pred_forward(x, w_t0, b_row0,
                           lr_decay=TRANS_LR_DECAY, move_bound=MOVE_BOUND))
    ref0 = trans_pred_reference(x, weight, jnp.zeros((O,), jnp.float32),
                                lr_decay=TRANS_LR_DECAY, move_bound=MOVE_BOUND)
    assert jnp.allclose(out0, ref0, rtol=2e-3, atol=2e-3)

    # multi-step grid + batch-padding path (small b_tile forces grid > 1)
    xb = jax.random.normal(kx2, (40, F), jnp.float32)
    outb = jax.block_until_ready(
        trans_pred_forward(xb, w_t, b_row,
                           lr_decay=TRANS_LR_DECAY, move_bound=MOVE_BOUND,
                           b_tile=16))
    refb = trans_pred_reference(xb, weight, bias,
                                lr_decay=TRANS_LR_DECAY, move_bound=MOVE_BOUND)
    assert outb.shape == (40, O), outb.shape
    assert jnp.allclose(outb, refb, rtol=2e-3, atol=2e-3)

    print("KERNEL_OK")
</pallas_src>

<mosaic_0001>
module attributes {stable_mosaic.version = 11 : i64} {
  func.func @_trans_pred_kernel(%arg0: i32, %arg1: memref<16x168xbf16, #tpu.memory_space<vmem>>, %arg2: memref<168x3xbf16, #tpu.memory_space<vmem>>, %arg3: memref<1x3xf32, #tpu.memory_space<vmem>>, %arg4: memref<16x3xf32, #tpu.memory_space<vmem>>) attributes {dimension_semantics = [#tpu.dimension_semantics<parallel>], iteration_bounds = array<i64: 1>, scalar_prefetch = 0 : i64, scratch_operands = 0 : i64, tpu.core_type = #tpu.core_type<tc>, window_params = [{transform_indices = @transform_0, window_bounds = array<i64: 16, 168>}, {pipeline_mode = #tpu.pipeline_mode<synchronous>, transform_indices = @transform_1, window_bounds = array<i64: 168, 3>}, {pipeline_mode = #tpu.pipeline_mode<synchronous>, transform_indices = @transform_2, window_bounds = array<i64: 1, 3>}, {transform_indices = @transform_3, window_bounds = array<i64: 16, 3>}]} {
    %c0 = arith.constant 0 : index
    %c0_0 = arith.constant 0 : index
    %0 = vector.load %arg1[%c0, %c0_0] : memref<16x168xbf16, #tpu.memory_space<vmem>>, vector<16x168xbf16>
    %c0_1 = arith.constant 0 : index
    %c0_2 = arith.constant 0 : index
    %1 = vector.load %arg2[%c0_1, %c0_2] : memref<168x3xbf16, #tpu.memory_space<vmem>>, vector<168x3xbf16>
    %cst = arith.constant dense<0.000000e+00> : vector<16x3xf32>
    %2 = tpu.matmul %0, %1, %cst {dimension_numbers = #tpu.dot_dimension_numbers<[1], [0], [0], [1], [0, 0, 1, 1], [], []>} : vector<16x168xbf16>, vector<168x3xbf16>, vector<16x3xf32> -> vector<16x3xf32>
    %c0_3 = arith.constant 0 : index
    %c0_4 = arith.constant 0 : index
    %3 = vector.load %arg3[%c0_3, %c0_4] : memref<1x3xf32, #tpu.memory_space<vmem>>, vector<1x3xf32>
    %4 = vector.broadcast %3 : vector<1x3xf32> to vector<16x3xf32>
    %5 = arith.addf %2, %4 : vector<16x3xf32>
    %cst_5 = arith.constant 1.000000e-01 : f32
    %6 = vector.broadcast %cst_5 : f32 to vector<16x3xf32>
    %7 = arith.mulf %5, %6 : vector<16x3xf32>
    %8 = math.tanh %7 : vector<16x3xf32>
    %cst_6 = arith.constant 5.000000e-01 : f32
    %9 = vector.broadcast %cst_6 : f32 to vector<16x3xf32>
    %10 = arith.mulf %8, %9 : vector<16x3xf32>
    %c0_7 = arith.constant 0 : index
    %c0_8 = arith.constant 0 : index
    %11 = vector.load %arg4[%c0_7, %c0_8] : memref<16x3xf32, #tpu.memory_space<vmem>>, vector<16x3xf32>
    tpu.vector_store %arg4[%c0_7, %c0_8], %10 {strides = array<i32>} : memref<16x3xf32, #tpu.memory_space<vmem>>, vector<16x3xf32>,
    return
  }
  func.func @transform_0(%arg0: i32) -> (i32, i32) {
    %c0_i32 = arith.constant 0 : i32
    %c0_i32_0 = arith.constant 0 : i32
    return %arg0, %c0_i32 : i32, i32
  }
  func.func @transform_1(%arg0: i32) -> (i32, i32) {
    %c0_i32 = arith.constant 0 : i32
    %c0_i32_0 = arith.constant 0 : i32
    %c0_i32_1 = arith.constant 0 : i32
    return %c0_i32, %c0_i32_0 : i32, i32
  }
  func.func @transform_2(%arg0: i32) -> (i32, i32) {
    %c0_i32 = arith.constant 0 : i32
    %c0_i32_0 = arith.constant 0 : i32
    %c0_i32_1 = arith.constant 0 : i32
    return %c0_i32, %c0_i32_0 : i32, i32
  }
  func.func @transform_3(%arg0: i32) -> (i32, i32) {
    %c0_i32 = arith.constant 0 : i32
    %c0_i32_0 = arith.constant 0 : i32
    return %arg0, %c0_i32 : i32, i32
  }
}

</mosaic_0001>

<llo_original>
// kernel: tpu_custom_call.1
$region0: #{tpu_custom_call.1}
  #allocation0 [shape = 'u32[]', space=smem, size = 0x4, offset = 0x4, fixed_abs, tag = 'smem constant byte address 0x4 - core index']
  #allocation1 [shape = 'u32[144,128]{1,0:T(1,128)}', space=vmem, size = 0x12000, scoped, tag = 'internal scratch']
  %s0 = inlined_call_operand.vmem [shape: bf16[16,168], index: 0, kind: input, shape index: {}]
  %s1 = inlined_call_operand.vmem [shape: bf16[168,3], index: 1, kind: input, shape index: {}]
  %s2 = inlined_call_operand.vmem [shape: f32[1,3], index: 2, kind: input, shape index: {}]
  %s3 = inlined_call_operand.vmem [shape: f32[16,3], index: 3, kind: output, shape index: {}]
  %s4 = sld [smem:[#allocation0]]
  $region22: #{tpu_custom_call.1} parent=0
    _
  %s6 = ssub.s32 1, %s4
  %s7 = scalar_select 0, %s6, %s4
  // Predicated region
  $region2: #{tpu_custom_call.1} parent=0 // pred_check
    _
  $region3: #{tpu_custom_call.1} parent=0 // pred_check_branch
    %9 = sbr.rel (0) target = $region5
  $region4: #{tpu_custom_call.1} parent=0 // pred_region
    _
  $region5: #{tpu_custom_call.1} parent=0 // pred_fallthru
    _
  // Predicated region
  $region6: #{tpu_custom_call.1} parent=0 // pred_check
    _
  $region7: #{tpu_custom_call.1} parent=0 // pred_check_branch
    %11 = sbr.rel (0) target = $region9
  $region8: #{tpu_custom_call.1} parent=0 // pred_region
    _
  $region9: #{tpu_custom_call.1} parent=0 // pred_fallthru
    _
  // Predicated region
  $region10: #{tpu_custom_call.1} parent=0 // pred_check
    _
  $region11: #{tpu_custom_call.1} parent=0 // pred_check_branch
    %13 = sbr.rel (0) target = $region13
  $region12: #{tpu_custom_call.1} parent=0 // pred_region
    _
  $region13: #{tpu_custom_call.1} parent=0 // pred_fallthru
    _
  %v15 = vld [vmem:[%s0] sm:$0xff]
  %v16 = vld [vmem:[%s0 + $0x8] sm:$0xff]
  %v17 = vld [vmem:[%s1] sm:$0xf]
  %v18 = vld [vmem:[%s1 + $0x4] sm:$0xf]
  %v19 = vld [vmem:[%s1 + $0x8] sm:$0xf]
  %v20 = vld [vmem:[%s1 + $0xc] sm:$0xf]
  %v21 = vld [vmem:[%s1 + $0x10] sm:$0xf]
  %v22 = vld [vmem:[%s1 + $0x14] sm:$0xf]
  %v23 = vld [vmem:[%s1 + $0x18] sm:$0xf]
  %v24 = vld [vmem:[%s1 + $0x1c] sm:$0xf]
  %v25 = vld [vmem:[%s1 + $0x20] sm:$0xf]
  %v26 = vld [vmem:[%s1 + $0x24] sm:$0xf]
  %v27 = vld [vmem:[%s1 + $0x28] sm:$0xf]
  %v28 = vld [vmem:[%s1 + $0x2c] sm:$0xf]
  %v29 = vld [vmem:[%s1 + $0x30] sm:$0xf]
  %v30 = vld [vmem:[%s1 + $0x34] sm:$0xf]
  %v31 = vld [vmem:[%s1 + $0x38] sm:$0xf]
  %v32 = vld [vmem:[%s1 + $0x3c] sm:$0xf]
  %v33 = vld [vmem:[%s1 + $0x40] sm:$0xf]
  %v34 = vld [vmem:[%s1 + $0x44] sm:$0xf]
  %v35 = vld [vmem:[%s1 + $0x48] sm:$0xf]
  %v36 = vld [vmem:[%s1 + $0x4c] sm:$0xf]
  %v37 = vld [vmem:[%s1 + $0x50] sm:$0xf]
  %v38 = vld [vmem:[%s2] sm:$0x1]
  %v40 = vlaneseq
  %v41 = vshrl.u32 %v40, 7
  %v42 = vsub.s32 0, %v41
  %v43 = vrot.slane %v38, %v42
  %v47 = vunpack.c.l.b16 %v15
  %v48 = vunpack.c.h.b16 %v15
  %v49 = vunpack.c.l.b16 %v16
  %v50 = vunpack.c.h.b16 %v16
  %v51 = vpack.c.b16 %v49, %v47
  %v52 = vpack.c.b16 %v50, %v48
  %v75 = vunpack.c.l.b16 %v17
  %v76 = vunpack.c.l.b16 %v18
  %v77 = vunpack.c.l.b16 %v19
  %v78 = vunpack.c.l.b16 %v20
  %v79 = vunpack.c.l.b16 %v21
  %v80 = vunpack.c.l.b16 %v22
  %v81 = vunpack.c.l.b16 %v23
  %v82 = vunpack.c.l.b16 %v24
  %v83 = vunpack.c.l.b16 %v25
  %v84 = vunpack.c.l.b16 %v26
  %v85 = vunpack.c.l.b16 %v27
  %v86 = vunpack.c.l.b16 %v28
  %v87 = vunpack.c.l.b16 %v29
  %v88 = vunpack.c.l.b16 %v30
  %v89 = vunpack.c.l.b16 %v31
  %v90 = vunpack.c.l.b16 %v32
  %v91 = vunpack.c.l.b16 %v33
  %v92 = vunpack.c.l.b16 %v34
  %v93 = vunpack.c.l.b16 %v35
  %v94 = vunpack.c.l.b16 %v36
  %v95 = vunpack.c.l.b16 %v37
  %v96 = vpack.c.b16 %v76, %v75
  %v97 = vpack.c.b16 %v78, %v77
  %v98 = vpack.c.b16 %v80, %v79
  %v99 = vpack.c.b16 %v82, %v81
  %v100 = vpack.c.b16 %v84, %v83
  %v101 = vpack.c.b16 %v86, %v85
  %v102 = vpack.c.b16 %v88, %v87
  %v103 = vpack.c.b16 %v90, %v89
  %v104 = vpack.c.b16 %v92, %v91
  %v105 = vpack.c.b16 %v94, %v93
  %v106 = vpack.c.b16 %v95, %v95
  %vm117 = vcmask 326656
  %v119 = vsel %vm117, %v52, 0
  %vm121 = vcmask 1043456
  %v123 = vsel %vm121, %v106, 0
  %125 = vmatprep.subr.bf16.mxu0 0
  %126 = vmatpush1.bf16.msra.mxu0 %v96
  %127 = vmatprep.subr.bf16.mxu0 0
  %128 = vmatpush1.bf16.msra.mxu0 %v97
  %129 = vmatprep.subr.bf16.mxu0 0
  %130 = vmatpush1.bf16.msra.mxu0 %v98
  %131 = vmatprep.subr.bf16.mxu0 0
  %132 = vmatpush1.bf16.msra.mxu0 %v99
  %133 = vmatprep.subr.bf16.mxu0 0
  %134 = vmatpush1.bf16.msra.mxu0 %v100
  %135 = vmatprep.subr.bf16.mxu0 0
  %136 = vmatpush1.bf16.msra.mxu0 %v101
  %137 = vmatprep.subr.bf16.mxu0 0
  %138 = vmatpush1.bf16.msra.mxu0 %v102
  %139 = vmatprep.subr.bf16.mxu0 0
  %140 = vmatpush1.bf16.msra.mxu0 %v103
  %141 = vmatprep.subr.bf16.mxu0 0
  %142 = vmatpush1.bf16.msra.mxu0 %v104
  %143 = vmatprep.subr.bf16.mxu0 0
  %144 = vmatpush1.bf16.msra.mxu0 %v105
  %145 = vmatprep.subr.bf16.mxu0 0
  %146 = vmatpush1.bf16.msra.mxu0 %v123
  %147 = vmatprep.subr.bf16.mxu0 0
  %148 = vmatpush1.bf16.msra.mxu0 0
  %149 = vmatprep.subr.bf16.mxu0 0
  %150 = vmatpush1.bf16.msra.mxu0 0
  %151 = vmatprep.subr.bf16.mxu0 0
  %152 = vmatpush1.bf16.msra.mxu0 0
  %153 = vmatprep.subr.bf16.mxu0 0
  %154 = vmatpush1.bf16.msra.mxu0 0
  %155 = vmatprep.subr.bf16.mxu0 0
  %156 = vmatpush1.bf16.msra.mxu0 0
  %157 = vmatprep.mubr.bf16.mxu0 %v119
  %158 = vmatmul.mubr.bf16.gmra.mrb[0].mxu0 %v51
  %v159 = vpop.f32.mrb[0].mxu0
  %v160 = vadd.f32 %v43, %v159
  %v161 = vpop.f32.mrb[0].mxu0
  %v162 = vpop.f32.mrb[0].mxu0
  %v163 = vadd.f32 %v43, %v162
  %v164 = vpop.f32.mrb[0].mxu0
  %165 = vdwg.mxu0
  %v166 = vmul.f32 %v160, 0.1
  %v167 = vmul.f32 %v163, 0.1
  %v168 = vtanh.pop %v166
  %v169 = vtanh.pop %v167
  %v170 = vmul.f32 %v168, 0.5
  %v171 = vmul.f32 %v169, 0.5
  %vm172 = vcmask 23552
  %173 = vst.msk [vmem:[%s3] sm:$0xff] %vm172, %v170
  %174 = vst.msk [vmem:[%s3 + $0x8] sm:$0xff] %vm172, %v171
  // Predicated region
  $region14: #{tpu_custom_call.1} parent=0 // pred_check
    _
  $region15: #{tpu_custom_call.1} parent=0 // pred_check_branch
    %176 = sbr.rel (0) target = $region17
  $region16: #{tpu_custom_call.1} parent=0 // pred_region
    _
  $region17: #{tpu_custom_call.1} parent=0 // pred_fallthru
    _
  // Predicated region
  $region18: #{tpu_custom_call.1} parent=0 // pred_check
    _
  $region19: #{tpu_custom_call.1} parent=0 // pred_check_branch
    %178 = sbr.rel (0) target = $region21
  $region20: #{tpu_custom_call.1} parent=0 // pred_region
    _
  $region21: #{tpu_custom_call.1} parent=0 // pred_fallthru
    _

</llo_original>
